<compile_context>
chip_gen: v6e
topology: v6e:2x2x1
jax: 0.10.0
libtpu: 0.0.40
codegen_flags: <defaults>
</compile_context>

<pallas_src>
import jax
import jax.numpy as jnp
from jax.experimental import pallas as pl
from jax.experimental.pallas import tpu as pltpu


def _round_up(x, m):
    return ((x + m - 1) // m) * m


def _sublane(itemsize):
    # min sublane tile: 8 for 4-byte, 16 for 2-byte, 32 for 1-byte dtypes
    return max(8, 32 // max(1, itemsize))


def _vmem_capacity_bytes():
    try:
        info = pltpu.get_tpu_info()
        for name in ("vmem_capacity_bytes", "vmem_size_bytes", "vmem_bytes"):
            v = getattr(info, name, None)
            if v:
                return int(v)
    except Exception:
        pass
    return 64 * 1024 * 1024  # conservative: v7x per-TensorCore capacity


def _pick_batch_block(B, C, H, W, mid, in_dtype, out_dtype):
    """Pick the per-grid-step batch block `bt` from a full VMEM model."""
    HW = H * W
    in_sz = jnp.dtype(in_dtype).itemsize
    out_sz = jnp.dtype(out_dtype).itemsize
    cap = _vmem_capacity_bytes()
    if cap >= 100 * 1024 * 1024:          # v5e / v6e: 128 MiB VMEM
        budget = 48 * 1024 * 1024
        vmem_limit = 80 * 1024 * 1024
    else:                                 # v7x (64 MiB / TC) or unknown
        budget = 20 * 1024 * 1024
        vmem_limit = 32 * 1024 * 1024

    n_sel = HW - W + 1
    # Small constant operands (double-buffered by the pipeline).
    const_bytes = 2 * (
        _round_up(mid, 8) * _round_up(C, 128) * 4                          # w1
        + _round_up(C, 8) * _round_up(mid, 128) * 4                        # w2
        + _round_up(n_sel, _sublane(in_sz)) * _round_up(H, 128) * in_sz    # s_sel
        + _round_up(HW, _sublane(in_sz)) * _round_up(H, 128) * in_sz)      # s_avg

    def need(bt):
        xblk = bt * _round_up(C, _sublane(in_sz)) * _round_up(HW, 128) * in_sz
        oblk = _round_up(C, _sublane(out_sz)) * _round_up(bt * H, 128) * out_sz
        p_sc = _round_up(C, 8) * _round_up(2 * bt * H, 128) * 4
        # 2x input double buffer + ~4x for in-kernel value temps/spills of the
        # slab, 2x output double buffer, scratch, constants, 2 MiB slack.
        return 6 * xblk + 2 * oblk + p_sc + const_bytes + 2 * 1024 * 1024

    fits = [d for d in range(1, B + 1)
            if B % d == 0 and d <= 128 and need(d) <= budget]
    if not fits:
        fits = [1]
    # Prefer: lane-dense output slab (bt*H % 128 == 0), then G >= 2 (keeps
    # both v7x TensorCores busy), then the largest block.
    bt = max(fits, key=lambda d: ((d * H) % 128 == 0, B // d >= 2, d))
    return bt, vmem_limit


def hattention(x, w1, w2):
    """x: (B, C, H, W) NCHW; w1: (C//r, C); w2: (C, C//r). Returns (B, C, H, 1)."""
    B, C, H, W = x.shape
    mid = w1.shape[0]
    assert w1.shape == (mid, C) and w2.shape == (C, mid)
    HW = H * W
    n_sel = HW - W + 1

    bt, vmem_limit = _pick_batch_block(B, C, H, W, mid, x.dtype, x.dtype)
    G = B // bt
    nh = bt * H

    # Lane-dense input view: free, contiguous reshape.
    x_flat = x.reshape(B, C, HW)

    # Pooling selectors (tiny constants, DMA'd into VMEM once):
    #   s_sel gathers the group-leader lane h*W of the max tree  -> max over W
    #   s_avg sums each W-lane group scaled by 1/W               -> mean over W
    kk = jnp.arange(n_sel, dtype=jnp.int32)[:, None]
    hh = jnp.arange(H, dtype=jnp.int32)[None, :]
    s_sel = (kk == hh * W).astype(x.dtype)
    kk2 = jnp.arange(HW, dtype=jnp.int32)[:, None]
    s_avg = (((kk2 >= hh * W) & (kk2 < (hh + 1) * W)).astype(x.dtype)
             * jnp.asarray(1.0 / W, dtype=x.dtype))

    def kernel(x_ref, w1_ref, w2_ref, ssel_ref, savg_ref, o_ref, p_ref):
        # x_ref : (bt, C, H*W) lane-dense block
        # o_ref : (1, C, bt*H) lane-packed output slab (batch-major, h-minor)
        # p_ref : (C, 2*bt*H) f32 scratch: [ max_b0..max_b{bt-1} | avg_b0.. ]
        xs = x_ref[...].reshape(bt * C, HW)

        # ---- max over each W-lane group: exact slice tree (no wraparound) ---
        y = xs
        cov = 1
        while cov < W:                              # static: log2(W)-ish steps
            s = min(cov, W - cov)
            n = y.shape[1]
            y = jnp.maximum(y[:, :n - s], y[:, s:])
            cov += s
        # Invariant: y[:, i] == max(xs[:, i:i+W]); group leader at column h*W.

        # ---- gather / mean via two MXU matmuls (f32 accumulation) -----------
        max_p = jnp.dot(y, ssel_ref[...], preferred_element_type=jnp.float32)
        avg_p = jnp.dot(xs, savg_ref[...], preferred_element_type=jnp.float32)
        # max_p, avg_p : (bt*C, H) f32

        # ---- repack to channel-major, lane-dense (C, 2*bt*H) ----------------
        # Value slices need static offsets -> bounded Python unroll (bt <= 128).
        for b in range(bt):
            p_ref[:, b * H:(b + 1) * H] = max_p[b * C:(b + 1) * C, :]
            p_ref[:, nh + b * H:nh + (b + 1) * H] = avg_p[b * C:(b + 1) * C, :]

        # ---- SE stage 1: single (mid, C) @ (C, 2*bt*H) matmul + ReLU --------
        w1m = w1_ref[...].astype(jnp.float32)
        h1 = jnp.maximum(
            jnp.dot(w1m, p_ref[...], preferred_element_type=jnp.float32), 0.0)
        # Fold the max/avg paths (stage 2 is linear); hoisted out of the loop.
        hsum = h1[:, :nh] + h1[:, nh:]

        # ---- SE stage 2 ------------------------------------------------------
        if mid <= 8:     # tiny bottleneck: broadcast FMAs on the VPU
            yout = None
            for m in range(mid):                    # static unroll over mid
                term = (w2_ref[:, m:m + 1].astype(jnp.float32)
                        * hsum[m:m + 1, :])
                yout = term if yout is None else yout + term
        else:            # large bottleneck: the MXU matmul is worth it
            yout = jnp.dot(w2_ref[...].astype(jnp.float32), hsum,
                           preferred_element_type=jnp.float32)

        # ---- sigmoid (EUP) + one lane-packed store ---------------------------
        o_ref[0] = jax.nn.sigmoid(yout).astype(o_ref.dtype)

    cost = pl.CostEstimate(
        flops=B * C * H * (4 * W + 8 * mid) + 4 * B * C * HW * H,
        transcendentals=B * C * H,
        bytes_accessed=(x.size * x.dtype.itemsize
                        + w1.size * w1.dtype.itemsize
                        + w2.size * w2.dtype.itemsize
                        + B * C * H * x.dtype.itemsize),
    )

    out_packed = pl.pallas_call(
        kernel,
        out_shape=jax.ShapeDtypeStruct((G, C, nh), x.dtype),
        grid_spec=pltpu.PrefetchScalarGridSpec(
            num_scalar_prefetch=0,
            grid=(G,),
            in_specs=[
                pl.BlockSpec((bt, C, HW), lambda g: (g, 0, 0)),
                pl.BlockSpec((mid, C), lambda g: (0, 0)),
                pl.BlockSpec((C, mid), lambda g: (0, 0)),
                pl.BlockSpec((n_sel, H), lambda g: (0, 0)),
                pl.BlockSpec((HW, H), lambda g: (0, 0)),
            ],
            out_specs=pl.BlockSpec((1, C, nh), lambda g: (g, 0, 0)),
            scratch_shapes=[
                pltpu.VMEM((C, 2 * nh), jnp.float32),
            ],
        ),
        compiler_params=pltpu.CompilerParams(
            dimension_semantics=("parallel",),   # shards batch grid over TCs
            vmem_limit_bytes=vmem_limit,
        ),
        cost_estimate=cost,
    )(x_flat, w1, w2, s_sel, s_avg)

    # Un-pack the lane-packed slab: (G, C, bt*H) -> (B, C, H, 1).
    # Pure layout plumbing on a tiny array, outside the kernel.
    out = (out_packed.reshape(G, C, bt, H)
           .transpose(0, 2, 1, 3)
           .reshape(B, C, H))
    return out[..., None]


if __name__ == "__main__":
    # Small shapes consistent with the module: channel=32, reduction=16 -> mid=2
    B, C, H, W = 2, 32, 16, 16
    reduction = 16
    mid = C // reduction

    key = jax.random.PRNGKey(0)
    kx, k1, k2 = jax.random.split(key, 3)

    x = jax.random.normal(kx, (B, C, H, W), dtype=jnp.float32)
    bound1 = (1.0 / C) ** 0.5
    bound2 = (1.0 / mid) ** 0.5
    w1 = jax.random.uniform(k1, (mid, C), jnp.float32, -bound1, bound1)
    w2 = jax.random.uniform(k2, (C, mid), jnp.float32, -bound2, bound2)

    out = hattention(x, w1, w2)
    out = jax.block_until_ready(out)

    # Pure-JAX reference (mirrors the PyTorch module).
    max_p = jnp.max(x, axis=-1)                      # (B, C, H)
    avg_p = jnp.mean(x, axis=-1)                     # (B, C, H)

    def se_ref(p):
        h = jnp.maximum(jnp.einsum("mc,bch->bmh", w1, p), 0.0)
        return jnp.einsum("cm,bmh->bch", w2, h)

    ref = jax.nn.sigmoid(se_ref(max_p) + se_ref(avg_p))[..., None]
    assert out.shape == (B, C, H, 1)
    err = float(jnp.max(jnp.abs(out - ref)))
    assert jnp.allclose(out, ref, atol=1e-4, rtol=1e-4), err

    print("KERNEL_OK")
</pallas_src>

<mosaic_0001>
module attributes {stable_mosaic.version = 11 : i64} {
  func.func @kernel(%arg0: i32, %arg1: memref<1x32x256xf32, #tpu.memory_space<vmem>>, %arg2: memref<2x32xf32, #tpu.memory_space<vmem>>, %arg3: memref<32x2xf32, #tpu.memory_space<vmem>>, %arg4: memref<241x16xf32, #tpu.memory_space<vmem>>, %arg5: memref<256x16xf32, #tpu.memory_space<vmem>>, %arg6: memref<1x32x16xf32, #tpu.memory_space<vmem>>, %arg7: memref<32x32xf32, #tpu.memory_space<vmem>>) attributes {dimension_semantics = [#tpu.dimension_semantics<parallel>], iteration_bounds = array<i64: 2>, scalar_prefetch = 0 : i64, scratch_operands = 1 : i64, tpu.core_type = #tpu.core_type<tc>, window_params = [{transform_indices = @transform_0, window_bounds = array<i64: 1, 32, 256>}, {pipeline_mode = #tpu.pipeline_mode<synchronous>, transform_indices = @transform_1, window_bounds = array<i64: 2, 32>}, {pipeline_mode = #tpu.pipeline_mode<synchronous>, transform_indices = @transform_2, window_bounds = array<i64: 32, 2>}, {pipeline_mode = #tpu.pipeline_mode<synchronous>, transform_indices = @transform_3, window_bounds = array<i64: 241, 16>}, {pipeline_mode = #tpu.pipeline_mode<synchronous>, transform_indices = @transform_4, window_bounds = array<i64: 256, 16>}, {transform_indices = @transform_5, window_bounds = array<i64: 1, 32, 16>}]} {
    %c0 = arith.constant 0 : index
    %c0_0 = arith.constant 0 : index
    %c0_1 = arith.constant 0 : index
    %0 = vector.load %arg1[%c0, %c0_0, %c0_1] : memref<1x32x256xf32, #tpu.memory_space<vmem>>, vector<1x32x256xf32>
    %1 = vector.shape_cast %0 : vector<1x32x256xf32> to vector<32x256xf32>
    %2 = vector.extract_strided_slice %1 {offsets = [0, 0], sizes = [32, 255], strides = [1, 1]} : vector<32x256xf32> to vector<32x255xf32>
    %3 = vector.extract_strided_slice %1 {offsets = [0, 1], sizes = [32, 255], strides = [1, 1]} : vector<32x256xf32> to vector<32x255xf32>
    %4 = arith.maximumf %2, %3 : vector<32x255xf32>
    %5 = vector.extract_strided_slice %4 {offsets = [0, 0], sizes = [32, 253], strides = [1, 1]} : vector<32x255xf32> to vector<32x253xf32>
    %6 = vector.extract_strided_slice %4 {offsets = [0, 2], sizes = [32, 253], strides = [1, 1]} : vector<32x255xf32> to vector<32x253xf32>
    %7 = arith.maximumf %5, %6 : vector<32x253xf32>
    %8 = vector.extract_strided_slice %7 {offsets = [0, 0], sizes = [32, 249], strides = [1, 1]} : vector<32x253xf32> to vector<32x249xf32>
    %9 = vector.extract_strided_slice %7 {offsets = [0, 4], sizes = [32, 249], strides = [1, 1]} : vector<32x253xf32> to vector<32x249xf32>
    %10 = arith.maximumf %8, %9 : vector<32x249xf32>
    %11 = vector.extract_strided_slice %10 {offsets = [0, 0], sizes = [32, 241], strides = [1, 1]} : vector<32x249xf32> to vector<32x241xf32>
    %12 = vector.extract_strided_slice %10 {offsets = [0, 8], sizes = [32, 241], strides = [1, 1]} : vector<32x249xf32> to vector<32x241xf32>
    %13 = arith.maximumf %11, %12 : vector<32x241xf32>
    %c0_2 = arith.constant 0 : index
    %c0_3 = arith.constant 0 : index
    %14 = vector.load %arg4[%c0_2, %c0_3] : memref<241x16xf32, #tpu.memory_space<vmem>>, vector<241x16xf32>
    %cst = arith.constant dense<0.000000e+00> : vector<32x16xf32>
    %15 = tpu.matmul %13, %14, %cst {dimension_numbers = #tpu.dot_dimension_numbers<[1], [0], [0], [1], [0, 0, 1, 1], [], []>} : vector<32x241xf32>, vector<241x16xf32>, vector<32x16xf32> -> vector<32x16xf32>
    %c0_4 = arith.constant 0 : index
    %c0_5 = arith.constant 0 : index
    %16 = vector.load %arg5[%c0_4, %c0_5] : memref<256x16xf32, #tpu.memory_space<vmem>>, vector<256x16xf32>
    %cst_6 = arith.constant dense<0.000000e+00> : vector<32x16xf32>
    %17 = tpu.matmul %1, %16, %cst_6 {dimension_numbers = #tpu.dot_dimension_numbers<[1], [0], [0], [1], [0, 0, 1, 1], [], []>} : vector<32x256xf32>, vector<256x16xf32>, vector<32x16xf32> -> vector<32x16xf32>
    %c0_7 = arith.constant 0 : index
    %c0_8 = arith.constant 0 : index
    %18 = vector.load %arg7[%c0_7, %c0_8] : memref<32x32xf32, #tpu.memory_space<vmem>>, vector<32x16xf32>
    tpu.vector_store %arg7[%c0_7, %c0_8], %15 {strides = array<i32>} : memref<32x32xf32, #tpu.memory_space<vmem>>, vector<32x16xf32>,
    %c0_9 = arith.constant 0 : index
    %c16 = arith.constant 16 : index
    %19 = vector.load %arg7[%c0_9, %c16] : memref<32x32xf32, #tpu.memory_space<vmem>>, vector<32x16xf32>
    tpu.vector_store %arg7[%c0_9, %c16], %17 {strides = array<i32>} : memref<32x32xf32, #tpu.memory_space<vmem>>, vector<32x16xf32>,
    %c0_10 = arith.constant 0 : index
    %c0_11 = arith.constant 0 : index
    %20 = vector.load %arg2[%c0_10, %c0_11] : memref<2x32xf32, #tpu.memory_space<vmem>>, vector<2x32xf32>
    %c0_12 = arith.constant 0 : index
    %c0_13 = arith.constant 0 : index
    %21 = vector.load %arg7[%c0_12, %c0_13] : memref<32x32xf32, #tpu.memory_space<vmem>>, vector<32x32xf32>
    %cst_14 = arith.constant dense<0.000000e+00> : vector<2x32xf32>
    %22 = tpu.matmul %20, %21, %cst_14 {dimension_numbers = #tpu.dot_dimension_numbers<[1], [0], [0], [1], [0, 0, 1, 1], [], []>} : vector<2x32xf32>, vector<32x32xf32>, vector<2x32xf32> -> vector<2x32xf32>
    %cst_15 = arith.constant 0.000000e+00 : f32
    %23 = vector.broadcast %cst_15 : f32 to vector<2x32xf32>
    %24 = arith.maximumf %22, %23 : vector<2x32xf32>
    %25 = vector.extract_strided_slice %24 {offsets = [0, 0], sizes = [2, 16], strides = [1, 1]} : vector<2x32xf32> to vector<2x16xf32>
    %26 = vector.extract_strided_slice %24 {offsets = [0, 16], sizes = [2, 16], strides = [1, 1]} : vector<2x32xf32> to vector<2x16xf32>
    %27 = arith.addf %25, %26 : vector<2x16xf32>
    %c0_16 = arith.constant 0 : index
    %c0_17 = arith.constant 0 : index
    %28 = vector.load %arg3[%c0_16, %c0_17] : memref<32x2xf32, #tpu.memory_space<vmem>>, vector<32x1xf32>
    %29 = vector.extract_strided_slice %27 {offsets = [0, 0], sizes = [1, 16], strides = [1, 1]} : vector<2x16xf32> to vector<1x16xf32>
    %30 = vector.broadcast %28 : vector<32x1xf32> to vector<32x16xf32>
    %31 = vector.broadcast %29 : vector<1x16xf32> to vector<32x16xf32>
    %32 = arith.mulf %30, %31 : vector<32x16xf32>
    %c0_18 = arith.constant 0 : index
    %c1 = arith.constant 1 : index
    %33 = vector.load %arg3[%c0_18, %c1] : memref<32x2xf32, #tpu.memory_space<vmem>>, vector<32x1xf32>
    %34 = vector.extract_strided_slice %27 {offsets = [1, 0], sizes = [1, 16], strides = [1, 1]} : vector<2x16xf32> to vector<1x16xf32>
    %35 = vector.broadcast %33 : vector<32x1xf32> to vector<32x16xf32>
    %36 = vector.broadcast %34 : vector<1x16xf32> to vector<32x16xf32>
    %37 = arith.mulf %35, %36 : vector<32x16xf32>
    %38 = arith.addf %32, %37 : vector<32x16xf32>
    %39 = arith.negf %38 : vector<32x16xf32>
    %40 = math.exp %39 : vector<32x16xf32>
    %cst_19 = arith.constant 1.000000e+00 : f32
    %41 = vector.broadcast %cst_19 : f32 to vector<32x16xf32>
    %42 = arith.addf %41, %40 : vector<32x16xf32>
    %43 = arith.divf %41, %42 : vector<32x16xf32>
    %c0_20 = arith.constant 0 : index
    %c0_21 = arith.constant 0 : index
    %c0_22 = arith.constant 0 : index
    %44 = vector.load %arg6[%c0_20, %c0_21, %c0_22] : memref<1x32x16xf32, #tpu.memory_space<vmem>>, vector<1x32x16xf32>
    %45 = vector.shape_cast %44 : vector<1x32x16xf32> to vector<32x16xf32>
    %46 = vector.shape_cast %43 : vector<32x16xf32> to vector<1x32x16xf32>
    tpu.vector_store %arg6[%c0_20, %c0_21, %c0_22], %46 {strides = array<i32>} : memref<1x32x16xf32, #tpu.memory_space<vmem>>, vector<1x32x16xf32>,
    return
  }
  func.func @transform_0(%arg0: i32) -> (i32, i32, i32) {
    %c0_i32 = arith.constant 0 : i32
    %c0_i32_0 = arith.constant 0 : i32
    %c0_i32_1 = arith.constant 0 : i32
    return %arg0, %c0_i32, %c0_i32_0 : i32, i32, i32
  }
  func.func @transform_1(%arg0: i32) -> (i32, i32) {
    %c0_i32 = arith.constant 0 : i32
    %c0_i32_0 = arith.constant 0 : i32
    %c0_i32_1 = arith.constant 0 : i32
    return %c0_i32, %c0_i32_0 : i32, i32
  }
  func.func @transform_2(%arg0: i32) -> (i32, i32) {
    %c0_i32 = arith.constant 0 : i32
    %c0_i32_0 = arith.constant 0 : i32
    %c0_i32_1 = arith.constant 0 : i32
    return %c0_i32, %c0_i32_0 : i32, i32
  }
  func.func @transform_3(%arg0: i32) -> (i32, i32) {
    %c0_i32 = arith.constant 0 : i32
    %c0_i32_0 = arith.constant 0 : i32
    %c0_i32_1 = arith.constant 0 : i32
    return %c0_i32, %c0_i32_0 : i32, i32
  }
  func.func @transform_4(%arg0: i32) -> (i32, i32) {
    %c0_i32 = arith.constant 0 : i32
    %c0_i32_0 = arith.constant 0 : i32
    %c0_i32_1 = arith.constant 0 : i32
    return %c0_i32, %c0_i32_0 : i32, i32
  }
  func.func @transform_5(%arg0: i32) -> (i32, i32, i32) {
    %c0_i32 = arith.constant 0 : i32
    %c0_i32_0 = arith.constant 0 : i32
    %c0_i32_1 = arith.constant 0 : i32
    return %arg0, %c0_i32, %c0_i32_0 : i32, i32, i32
  }
}

</mosaic_0001>

<llo_original>
// kernel: tpu_custom_call.1
$region0: #{tpu_custom_call.1}
  #allocation0 [shape = 'u32[]', space=smem, size = 0x4, offset = 0x4, fixed_abs, tag = 'smem constant byte address 0x4 - core index']
  #allocation1 [shape = 'u32[144,128]{1,0:T(1,128)}', space=vmem, size = 0x12000, scoped, tag = 'internal scratch']
  #allocation2 [shape = 'f32[32,32]{1,0:T(8,128)}', space=vmem, size = 0x4000, scoped, tag = 'scratch operand']
  %s0 = inlined_call_operand.vmem [shape: f32[2,32,256], index: 0, kind: input, shape index: {}]
  %s1 = inlined_call_operand.vmem [shape: f32[2,32], index: 1, kind: input, shape index: {}]
  %s2 = inlined_call_operand.vmem [shape: f32[32,2], index: 2, kind: input, shape index: {}]
  %s3 = inlined_call_operand.vmem [shape: f32[241,16], index: 3, kind: input, shape index: {}]
  %s4 = inlined_call_operand.vmem [shape: f32[256,16], index: 4, kind: input, shape index: {}]
  %s5 = inlined_call_operand.vmem [shape: f32[2,32,16], index: 5, kind: output, shape index: {}]
  %s6 = sld [smem:[#allocation0]]
  $region53: #{tpu_custom_call.1} parent=0
    _
  %s8 = ssub.s32 1, %s6
  %s9 = scalar_select 0, %s8, %s6
  loop: start=0, step=1, limit=4
  $region2: #{tpu_custom_call.1} parent=0 // loop_pre_header
    _
  $region3: #{tpu_custom_call.1} parent=0 // loop_header
    %s11 = sphi 0, %s15
    %p12 = scmp.ge.s32.totalorder %s11, 4
    %s21 = sphi 0, %s23
    %s24 = sphi 0, %s21
    %s25 = sphi 0, %s24
    %s41 = sphi 0, %s25
    %s45 = sphi 0, %s45
    %s47 = sphi 0, %s45
    %s48 = sphi 0, %s47
    %s62 = sphi 0, %s48
    %s66 = sphi 0, %s66
    %s68 = sphi 0, %s66
    %s69 = sphi 0, %s68
    %s83 = sphi 0, %s69
    %s87 = sphi 0, %s87
    %s89 = sphi 0, %s87
    %s90 = sphi 0, %s89
    %s104 = sphi 0, %s90
    %s108 = sphi 0, %s108
    %s110 = sphi 0, %s108
    %s111 = sphi 0, %s110
    %s125 = sphi 0, %s111
    %s131 = sphi 0, %s133
    %s134 = sphi 0, %s131
    %s135 = sphi 0, %s134
    %s151 = sphi 0, %s135
  $region4: #{tpu_custom_call.1} parent=0 // loop_header_branch
    %14 = sbr.rel (%p12) target = $region8
  $region5: #{tpu_custom_call.1} parent=0 // loop_body
    %s16 = ssub.s32 %s11, 1
    %s17 = ssub.s32 %s11, 2
    %s18 = sadd.s32 %s11, 1
    %s19 = ssub.s32 %s11, %s18
    %p20 = scmp.eq.s32.totalorder %s19, 0
    %s22 = sadd.s32 %s21, 1
    %s23 = scalar_select %p20, %s21, %s22
    %p26 = pneg %p20
    %p27 = scmp.eq.s32.totalorder %s11, 1
    %p28 = por %p26, %p27
    %p29 = scmp.ne.s32.totalorder %s21, %s24
    %p30 = scmp.eq.s32.totalorder %s11, 0
    %p31 = por %p29, %p30
    %p32 = scmp.ne.s32.totalorder %s21, %s24
    %p33 = scmp.eq.s32.totalorder %s16, 1
    %p34 = por %p32, %p33
    %p35 = scmp.ne.s32.totalorder %s24, %s25
    %p36 = scmp.eq.s32.totalorder %s16, 0
    %p37 = por %p35, %p36
    %p38 = scmp.ne.s32.totalorder %s24, %s25
    %p39 = scmp.eq.s32.totalorder %s17, 1
    %p40 = por %p38, %p39
    %p42 = scmp.ne.s32.totalorder %s25, %s41
    %p43 = scmp.eq.s32.totalorder %s17, 0
    %p44 = por %p42, %p43
    %s46 = sadd.s32 %s45, 1
    %p49 = scmp.eq.s32.totalorder %s11, 1
    %p50 = scmp.ne.s32.totalorder %s45, %s47
    %p51 = scmp.eq.s32.totalorder %s11, 0
    %p52 = por %p50, %p51
    %p53 = scmp.ne.s32.totalorder %s45, %s47
    %p54 = scmp.eq.s32.totalorder %s16, 1
    %p55 = por %p53, %p54
    %p56 = scmp.ne.s32.totalorder %s47, %s48
    %p57 = scmp.eq.s32.totalorder %s16, 0
    %p58 = por %p56, %p57
    %p59 = scmp.ne.s32.totalorder %s47, %s48
    %p60 = scmp.eq.s32.totalorder %s17, 1
    %p61 = por %p59, %p60
    %p63 = scmp.ne.s32.totalorder %s48, %s62
    %p64 = scmp.eq.s32.totalorder %s17, 0
    %p65 = por %p63, %p64
    %s67 = sadd.s32 %s66, 1
    %p70 = scmp.eq.s32.totalorder %s11, 1
    %p71 = scmp.ne.s32.totalorder %s66, %s68
    %p72 = scmp.eq.s32.totalorder %s11, 0
    %p73 = por %p71, %p72
    %p74 = scmp.ne.s32.totalorder %s66, %s68
    %p75 = scmp.eq.s32.totalorder %s16, 1
    %p76 = por %p74, %p75
    %p77 = scmp.ne.s32.totalorder %s68, %s69
    %p78 = scmp.eq.s32.totalorder %s16, 0
    %p79 = por %p77, %p78
    %p80 = scmp.ne.s32.totalorder %s68, %s69
    %p81 = scmp.eq.s32.totalorder %s17, 1
    %p82 = por %p80, %p81
    %p84 = scmp.ne.s32.totalorder %s69, %s83
    %p85 = scmp.eq.s32.totalorder %s17, 0
    %p86 = por %p84, %p85
    %s88 = sadd.s32 %s87, 1
    %p91 = scmp.eq.s32.totalorder %s11, 1
    %p92 = scmp.ne.s32.totalorder %s87, %s89
    %p93 = scmp.eq.s32.totalorder %s11, 0
    %p94 = por %p92, %p93
    %p95 = scmp.ne.s32.totalorder %s87, %s89
    %p96 = scmp.eq.s32.totalorder %s16, 1
    %p97 = por %p95, %p96
    %p98 = scmp.ne.s32.totalorder %s89, %s90
    %p99 = scmp.eq.s32.totalorder %s16, 0
    %p100 = por %p98, %p99
    %p101 = scmp.ne.s32.totalorder %s89, %s90
    %p102 = scmp.eq.s32.totalorder %s17, 1
    %p103 = por %p101, %p102
    %p105 = scmp.ne.s32.totalorder %s90, %s104
    %p106 = scmp.eq.s32.totalorder %s17, 0
    %p107 = por %p105, %p106
    %s109 = sadd.s32 %s108, 1
    %p112 = scmp.eq.s32.totalorder %s11, 1
    %p113 = scmp.ne.s32.totalorder %s108, %s110
    %p114 = scmp.eq.s32.totalorder %s11, 0
    %p115 = por %p113, %p114
    %p116 = scmp.ne.s32.totalorder %s108, %s110
    %p117 = scmp.eq.s32.totalorder %s16, 1
    %p118 = por %p116, %p117
    %p119 = scmp.ne.s32.totalorder %s110, %s111
    %p120 = scmp.eq.s32.totalorder %s16, 0
    %p121 = por %p119, %p120
    %p122 = scmp.ne.s32.totalorder %s110, %s111
    %p123 = scmp.eq.s32.totalorder %s17, 1
    %p124 = por %p122, %p123
    %p126 = scmp.ne.s32.totalorder %s111, %s125
    %p127 = scmp.eq.s32.totalorder %s17, 0
    %p128 = por %p126, %p127
    %s129 = ssub.s32 %s11, %s18
    %p130 = scmp.eq.s32.totalorder %s129, 0
    %s132 = sadd.s32 %s131, 1
    %s133 = scalar_select %p130, %s131, %s132
    %p136 = pneg %p130
    %p137 = scmp.eq.s32.totalorder %s11, 1
    %p138 = por %p136, %p137
    %p139 = scmp.ne.s32.totalorder %s131, %s134
    %p140 = scmp.eq.s32.totalorder %s11, 0
    %p141 = por %p139, %p140
    %p142 = scmp.ne.s32.totalorder %s131, %s134
    %p143 = scmp.eq.s32.totalorder %s16, 1
    %p144 = por %p142, %p143
    %p145 = scmp.ne.s32.totalorder %s134, %s135
    %p146 = scmp.eq.s32.totalorder %s16, 0
    %p147 = por %p145, %p146
    %p148 = scmp.ne.s32.totalorder %s134, %s135
    %p149 = scmp.eq.s32.totalorder %s17, 1
    %p150 = por %p148, %p149
    %p152 = scmp.ne.s32.totalorder %s135, %s151
    %p153 = scmp.eq.s32.totalorder %s17, 0
    %p154 = por %p152, %p153
    %p155 = scmp.le.s32.totalorder 1, %s11
    %p156 = scmp.lt.s32.totalorder %s11, 3
    %p157 = pnand %p155, %p156
    %p158 = pneg %p157
    // Predicated region
    $region9: #{tpu_custom_call.1} parent=5 // pred_check
      _
    $region10: #{tpu_custom_call.1} parent=5 // pred_check_branch
      %160 = sbr.rel (%p157) target = $region12
    $region11: #{tpu_custom_call.1} parent=5 // pred_region
      %s161 = ssub.s32 %s11, 1
      // Predicated region
      $region13: #{tpu_custom_call.1} parent=11 // pred_check
        %p162 = pneg %p58
      $region14: #{tpu_custom_call.1} parent=11 // pred_check_branch
        %164 = sbr.rel (%p162) target = $region16
      $region15: #{tpu_custom_call.1} parent=11 // pred_region
        _
      $region16: #{tpu_custom_call.1} parent=11 // pred_fallthru
        _
      // Predicated region
      $region17: #{tpu_custom_call.1} parent=11 // pred_check
        %p165 = pneg %p79
      $region18: #{tpu_custom_call.1} parent=11 // pred_check_branch
        %167 = sbr.rel (%p165) target = $region20
      $region19: #{tpu_custom_call.1} parent=11 // pred_region
        _
      $region20: #{tpu_custom_call.1} parent=11 // pred_fallthru
        _
      // Predicated region
      $region21: #{tpu_custom_call.1} parent=11 // pred_check
        %p168 = pneg %p100
      $region22: #{tpu_custom_call.1} parent=11 // pred_check_branch
        %170 = sbr.rel (%p168) target = $region24
      $region23: #{tpu_custom_call.1} parent=11 // pred_region
        _
      $region24: #{tpu_custom_call.1} parent=11 // pred_fallthru
        _
      // Predicated region
      $region25: #{tpu_custom_call.1} parent=11 // pred_check
        %p171 = pneg %p121
      $region26: #{tpu_custom_call.1} parent=11 // pred_check_branch
        %173 = sbr.rel (%p171) target = $region28
      $region27: #{tpu_custom_call.1} parent=11 // pred_region
        _
      $region28: #{tpu_custom_call.1} parent=11 // pred_fallthru
        _
    $region12: #{tpu_custom_call.1} parent=5 // pred_fallthru
      _
    %p174 = scmp.lt.s32.totalorder %s11, 2
    // Predicated region
    $region29: #{tpu_custom_call.1} parent=5 // pred_check
      %p175 = pneg %p174
    $region30: #{tpu_custom_call.1} parent=5 // pred_check_branch
      %177 = sbr.rel (%p175) target = $region32
    $region31: #{tpu_custom_call.1} parent=5 // pred_region
      // Predicated region
      $region33: #{tpu_custom_call.1} parent=31 // pred_check
        %p178 = pneg %p31
      $region34: #{tpu_custom_call.1} parent=31 // pred_check_branch
        %180 = sbr.rel (%p178) target = $region36
      $region35: #{tpu_custom_call.1} parent=31 // pred_region
        %p181 = scmp.lt.s32.totalorder %s11, 1
        %s182 = scalar_select %p181, %s11, 1
        %s183 = smul.addr %s182, 8
        %s184 = smul.addr %s183, 8
        %s185 = scalar_lea.vmem %s0, %s184
      $region36: #{tpu_custom_call.1} parent=31 // pred_fallthru
        _
    $region32: #{tpu_custom_call.1} parent=5 // pred_fallthru
      _
    %p186 = scmp.le.s32.totalorder 1, %s11
    %p187 = scmp.lt.s32.totalorder %s11, 3
    %p188 = pnand %p186, %p187
    %p189 = pneg %p188
    // Predicated region
    $region37: #{tpu_custom_call.1} parent=5 // pred_check
      _
    $region38: #{tpu_custom_call.1} parent=5 // pred_check_branch
      %191 = sbr.rel (%p188) target = $region40
    $region39: #{tpu_custom_call.1} parent=5 // pred_region
      %s192 = ssub.s32 %s11, 1
      %p193 = scmp.lt.s32.totalorder %s16, 1
      %s194 = scalar_select %p193, %s16, 1
      %s195 = smul.addr %s194, 8
      %s196 = smul.addr %s195, 8
      %s197 = scalar_lea.vmem %s0, %s196
      %p198 = pneg %p37
      %p199 = pneg %p34
      %p200 = pneg %p58
      %p201 = pneg %p55
      %p202 = pneg %p79
      %p203 = pneg %p76
      %p204 = pneg %p100
      %p205 = pneg %p97
      %p206 = pneg %p121
      %p207 = pneg %p118
      %p208 = pneg %p147
      %p209 = pneg %p144
      %p210 = scmp.lt.s32.totalorder %s16, 1
      %s211 = scalar_select %p210, %s16, 1
      %s212 = smul.addr %s211, 4
      %s213 = smul.addr %s212, 8
      %s214 = scalar_lea.vmem %s5, %s213
      %p215 = scmp.lt.s32.totalorder %s16, 1
      %s216 = scalar_select %p215, %s16, 1
      %s217 = smul.addr %s216, 8
      %s218 = smul.addr %s217, 8
      %s219 = scalar_lea.vmem %s0, %s218
      %p220 = scmp.lt.s32.totalorder %s16, 1
      %s221 = scalar_select %p220, %s16, 1
      %s222 = smul.addr %s221, 4
      %s223 = smul.addr %s222, 8
      %s224 = scalar_lea.vmem %s5, %s223
      %v225 = vld [vmem:[%s219] sm:$0xff]
      %v226 = vld [vmem:[%s219 + $0x8] sm:$0xff]
      %v227 = vld [vmem:[%s219 + $0x10] sm:$0xff]
      %v228 = vld [vmem:[%s219 + $0x18] sm:$0xff]
      %v229 = vld [vmem:[%s219 + $0x20] sm:$0xff]
      %v230 = vld [vmem:[%s219 + $0x28] sm:$0xff]
      %v231 = vld [vmem:[%s219 + $0x30] sm:$0xff]
      %v232 = vld [vmem:[%s219 + $0x38] sm:$0xff]
      %241 = vrot.lane.b32.xlu0 %v225, 127
      %v242 = vpop.permute.xlu0 %241
      %243 = vrot.lane.b32.xlu0 %v226, 127
      %v244 = vpop.permute.xlu0 %243
      %245 = vrot.lane.b32.xlu0 %v227, 127
      %v246 = vpop.permute.xlu0 %245
      %247 = vrot.lane.b32.xlu0 %v228, 127
      %v248 = vpop.permute.xlu0 %247
      %249 = vrot.lane.b32.xlu0 %v229, 127
      %v250 = vpop.permute.xlu0 %249
      %251 = vrot.lane.b32.xlu0 %v230, 127
      %v252 = vpop.permute.xlu0 %251
      %253 = vrot.lane.b32.xlu0 %v231, 127
      %v254 = vpop.permute.xlu0 %253
      %255 = vrot.lane.b32.xlu0 %v232, 127
      %v256 = vpop.permute.xlu0 %255
      %vm257 = vcmask 1039360
      %v258 = vsel %vm257, %v242, %v244
      %v259 = vsel %vm257, %v246, %v248
      %v260 = vsel %vm257, %v250, %v252
      %v261 = vsel %vm257, %v254, %v256
      %v270 = vmax.f32 %v225, %v258
      %v271 = vmax.f32 %v226, %v244
      %v272 = vmax.f32 %v227, %v259
      %v273 = vmax.f32 %v228, %v248
      %v274 = vmax.f32 %v229, %v260
      %v275 = vmax.f32 %v230, %v252
      %v276 = vmax.f32 %v231, %v261
      %v277 = vmax.f32 %v232, %v256
      %286 = vrot.lane.b32.xlu0 %v270, 126
      %v287 = vpop.permute.xlu0 %286
      %288 = vrot.lane.b32.xlu0 %v271, 126
      %v289 = vpop.permute.xlu0 %288
      %290 = vrot.lane.b32.xlu0 %v272, 126
      %v291 = vpop.permute.xlu0 %290
      %292 = vrot.lane.b32.xlu0 %v273, 126
      %v293 = vpop.permute.xlu0 %292
      %294 = vrot.lane.b32.xlu0 %v274, 126
      %v295 = vpop.permute.xlu0 %294
      %296 = vrot.lane.b32.xlu0 %v275, 126
      %v297 = vpop.permute.xlu0 %296
      %298 = vrot.lane.b32.xlu0 %v276, 126
      %v299 = vpop.permute.xlu0 %298
      %300 = vrot.lane.b32.xlu0 %v277, 126
      %v301 = vpop.permute.xlu0 %300
      %vm302 = vcmask 1031168
      %v303 = vsel %vm302, %v287, %v289
      %v304 = vsel %vm302, %v291, %v293
      %v305 = vsel %vm302, %v295, %v297
      %v306 = vsel %vm302, %v299, %v301
      %v315 = vmax.f32 %v270, %v303
      %v316 = vmax.f32 %v271, %v289
      %v317 = vmax.f32 %v272, %v304
      %v318 = vmax.f32 %v273, %v293
      %v319 = vmax.f32 %v274, %v305
      %v320 = vmax.f32 %v275, %v297
      %v321 = vmax.f32 %v276, %v306
      %v322 = vmax.f32 %v277, %v301
      %331 = vrot.lane.b32.xlu0 %v315, 124
      %v332 = vpop.permute.xlu0 %331
      %333 = vrot.lane.b32.xlu0 %v316, 124
      %v334 = vpop.permute.xlu0 %333
      %335 = vrot.lane.b32.xlu0 %v317, 124
      %v336 = vpop.permute.xlu0 %335
      %337 = vrot.lane.b32.xlu0 %v318, 124
      %v338 = vpop.permute.xlu0 %337
      %339 = vrot.lane.b32.xlu0 %v319, 124
      %v340 = vpop.permute.xlu0 %339
      %341 = vrot.lane.b32.xlu0 %v320, 124
      %v342 = vpop.permute.xlu0 %341
      %343 = vrot.lane.b32.xlu0 %v321, 124
      %v344 = vpop.permute.xlu0 %343
      %345 = vrot.lane.b32.xlu0 %v322, 124
      %v346 = vpop.permute.xlu0 %345
      %vm347 = vcmask 1014784
      %v348 = vsel %vm347, %v332, %v334
      %v349 = vsel %vm347, %v336, %v338
      %v350 = vsel %vm347, %v340, %v342
      %v351 = vsel %vm347, %v344, %v346
      %v360 = vmax.f32 %v315, %v348
      %v361 = vmax.f32 %v316, %v334
      %v362 = vmax.f32 %v317, %v349
      %v363 = vmax.f32 %v318, %v338
      %v364 = vmax.f32 %v319, %v350
      %v365 = vmax.f32 %v320, %v342
      %v366 = vmax.f32 %v321, %v351
      %v367 = vmax.f32 %v322, %v346
      %376 = vrot.lane.b32.xlu0 %v360, 120
      %v377 = vpop.permute.xlu0 %376
      %378 = vrot.lane.b32.xlu0 %v361, 120
      %v379 = vpop.permute.xlu0 %378
      %380 = vrot.lane.b32.xlu0 %v362, 120
      %v381 = vpop.permute.xlu0 %380
      %382 = vrot.lane.b32.xlu0 %v363, 120
      %v383 = vpop.permute.xlu0 %382
      %384 = vrot.lane.b32.xlu0 %v364, 120
      %v385 = vpop.permute.xlu0 %384
      %386 = vrot.lane.b32.xlu0 %v365, 120
      %v387 = vpop.permute.xlu0 %386
      %388 = vrot.lane.b32.xlu0 %v366, 120
      %v389 = vpop.permute.xlu0 %388
      %390 = vrot.lane.b32.xlu0 %v367, 120
      %v391 = vpop.permute.xlu0 %390
      %vm392 = vcmask 982016
      %v393 = vsel %vm392, %v377, %v379
      %v394 = vsel %vm392, %v381, %v383
      %v395 = vsel %vm392, %v385, %v387
      %v396 = vsel %vm392, %v389, %v391
      %v405 = vmax.f32 %v360, %v393
      %v406 = vmax.f32 %v361, %v379
      %v407 = vmax.f32 %v362, %v394
      %v408 = vmax.f32 %v363, %v383
      %v409 = vmax.f32 %v364, %v395
      %v410 = vmax.f32 %v365, %v387
      %v411 = vmax.f32 %v366, %v396
      %v412 = vmax.f32 %v367, %v391
      %v413 = vld [vmem:[%s3] sm:$0xff]
      %v414 = vld [vmem:[%s3 + $0x8] sm:$0xff]
      %v415 = vld [vmem:[%s3 + $0x10] sm:$0xff]
      %v416 = vld [vmem:[%s3 + $0x18] sm:$0xff]
      %v417 = vld [vmem:[%s3 + $0x20] sm:$0xff]
      %v418 = vld [vmem:[%s3 + $0x28] sm:$0xff]
      %v419 = vld [vmem:[%s3 + $0x30] sm:$0xff]
      %v420 = vld [vmem:[%s3 + $0x38] sm:$0xff]
      %v421 = vld [vmem:[%s3 + $0x40] sm:$0xff]
      %v422 = vld [vmem:[%s3 + $0x48] sm:$0xff]
      %v423 = vld [vmem:[%s3 + $0x50] sm:$0xff]
      %v424 = vld [vmem:[%s3 + $0x58] sm:$0xff]
      %v425 = vld [vmem:[%s3 + $0x60] sm:$0xff]
      %v426 = vld [vmem:[%s3 + $0x68] sm:$0xff]
      %v427 = vld [vmem:[%s3 + $0x70] sm:$0xff]
      %v428 = vld [vmem:[%s3 + $0x78] sm:$0xff]
      %v429 = vld [vmem:[%s3 + $0x80] sm:$0xff]
      %v430 = vld [vmem:[%s3 + $0x88] sm:$0xff]
      %v431 = vld [vmem:[%s3 + $0x90] sm:$0xff]
      %v432 = vld [vmem:[%s3 + $0x98] sm:$0xff]
      %v433 = vld [vmem:[%s3 + $0xa0] sm:$0xff]
      %v434 = vld [vmem:[%s3 + $0xa8] sm:$0xff]
      %v435 = vld [vmem:[%s3 + $0xb0] sm:$0xff]
      %v436 = vld [vmem:[%s3 + $0xb8] sm:$0xff]
      %v437 = vld [vmem:[%s3 + $0xc0] sm:$0xff]
      %v438 = vld [vmem:[%s3 + $0xc8] sm:$0xff]
      %v439 = vld [vmem:[%s3 + $0xd0] sm:$0xff]
      %v440 = vld [vmem:[%s3 + $0xd8] sm:$0xff]
      %v441 = vld [vmem:[%s3 + $0xe0] sm:$0xff]
      %v442 = vld [vmem:[%s3 + $0xe8] sm:$0xff]
      %v443 = vld [vmem:[%s3 + $0xf0] sm:$0x1]
      %vm444 = vcmask 924672
      %v446 = vsel %vm444, %v406, 0
      %v449 = vsel %vm444, %v408, 0
      %v452 = vsel %vm444, %v410, 0
      %v455 = vsel %vm444, %v412, 0
      %vm457 = vcmask 1040384
      %v459 = vsel %vm457, %v443, 0
      %461 = vmatprep.subr.mxu0 0.0
      %462 = vmatpush1.msra.mxu0 %v428
      %463 = vmatprep.subr.mxu0 0.0
      %464 = vmatpush1.msra.mxu0 %v427
      %465 = vmatprep.subr.mxu0 0.0
      %466 = vmatpush1.msra.mxu0 %v426
      %467 = vmatprep.subr.mxu0 0.0
      %468 = vmatpush1.msra.mxu0 %v425
      %469 = vmatprep.subr.mxu0 0.0
      %470 = vmatpush1.msra.mxu0 %v424
      %471 = vmatprep.subr.mxu0 0.0
      %472 = vmatpush1.msra.mxu0 %v423
      %473 = vmatprep.subr.mxu0 0.0
      %474 = vmatpush1.msra.mxu0 %v422
      %475 = vmatprep.subr.mxu0 0.0
      %476 = vmatpush1.msra.mxu0 %v421
      %477 = vmatprep.subr.mxu0 0.0
      %478 = vmatpush1.msra.mxu0 %v420
      %479 = vmatprep.subr.mxu0 0.0
      %480 = vmatpush1.msra.mxu0 %v419
      %481 = vmatprep.subr.mxu0 0.0
      %482 = vmatpush1.msra.mxu0 %v418
      %483 = vmatprep.subr.mxu0 0.0
      %484 = vmatpush1.msra.mxu0 %v417
      %485 = vmatprep.subr.mxu0 0.0
      %486 = vmatpush1.msra.mxu0 %v416
      %487 = vmatprep.subr.mxu0 0.0
      %488 = vmatpush1.msra.mxu0 %v415
      %489 = vmatprep.subr.mxu0 0.0
      %490 = vmatpush1.msra.mxu0 %v414
      %491 = vmatprep.subr.mxu0 0.0
      %492 = vmatpush1.msra.mxu0 %v413
      %493 = vmatprep.subr.mxu0 0.0
      %494 = vmatpush2.msra.mxu0 0.0
      %495 = vmatprep.subr.mxu0 0.0
      %496 = vmatpush2.msra.mxu0 %v459
      %497 = vmatprep.subr.mxu0 0.0
      %498 = vmatpush2.msra.mxu0 %v442
      %499 = vmatprep.subr.mxu0 0.0
      %500 = vmatpush2.msra.mxu0 %v441
      %501 = vmatprep.subr.mxu0 0.0
      %502 = vmatpush2.msra.mxu0 %v440
      %503 = vmatprep.subr.mxu0 0.0
      %504 = vmatpush2.msra.mxu0 %v439
      %505 = vmatprep.subr.mxu0 0.0
      %506 = vmatpush2.msra.mxu0 %v438
      %507 = vmatprep.subr.mxu0 0.0
      %508 = vmatpush2.msra.mxu0 %v437
      %509 = vmatprep.subr.mxu0 0.0
      %510 = vmatpush2.msra.mxu0 %v436
      %511 = vmatprep.subr.mxu0 0.0
      %512 = vmatpush2.msra.mxu0 %v435
      %513 = vmatprep.subr.mxu0 0.0
      %514 = vmatpush2.msra.mxu0 %v434
      %515 = vmatprep.subr.mxu0 0.0
      %516 = vmatpush2.msra.mxu0 %v433
      %517 = vmatprep.subr.mxu0 0.0
      %518 = vmatpush2.msra.mxu0 %v432
      %519 = vmatprep.subr.mxu0 0.0
      %520 = vmatpush2.msra.mxu0 %v431
      %521 = vmatprep.subr.mxu0 0.0
      %522 = vmatpush2.msra.mxu0 %v430
      %523 = vmatprep.subr.mxu0 0.0
      %524 = vmatpush2.msra.mxu0 %v429
      %525 = vmatprep.mubr.f32.mxu0 %v446
      %526 = vmatmul.mubr.f32.gmra.mxu0 %v405
      %v527 = vpop.f32.mrf.mxu0
      %v528 = vadd.f32 0.0, %v527
      %v529 = vpop.f32.mrf.mxu0
      %530 = vmatprep.mubr.f32.mxu0 %v449
      %531 = vmatmul.mubr.f32.gmra.mxu0 %v407
      %v532 = vpop.f32.mrf.mxu0
      %v533 = vadd.f32 0.0, %v532
      %v534 = vpop.f32.mrf.mxu0
      %535 = vmatprep.mubr.f32.mxu0 %v452
      %536 = vmatmul.mubr.f32.gmra.mxu0 %v409
      %v537 = vpop.f32.mrf.mxu0
      %v538 = vadd.f32 0.0, %v537
      %v539 = vpop.f32.mrf.mxu0
      %540 = vmatprep.mubr.f32.mxu0 %v455
      %541 = vmatmul.mubr.f32.gmra.mxu0 %v411
      %v542 = vpop.f32.mrf.mxu0
      %v543 = vadd.f32 0.0, %v542
      %v544 = vpop.f32.mrf.mxu0
      %545 = vdwg.mxu0
      %v546 = vld [vmem:[%s4] sm:$0xff]
      %v547 = vld [vmem:[%s4 + $0x8] sm:$0xff]
      %v548 = vld [vmem:[%s4 + $0x10] sm:$0xff]
      %v549 = vld [vmem:[%s4 + $0x18] sm:$0xff]
      %v550 = vld [vmem:[%s4 + $0x20] sm:$0xff]
      %v551 = vld [vmem:[%s4 + $0x28] sm:$0xff]
      %v552 = vld [vmem:[%s4 + $0x30] sm:$0xff]
      %v553 = vld [vmem:[%s4 + $0x38] sm:$0xff]
      %v554 = vld [vmem:[%s4 + $0x40] sm:$0xff]
      %v555 = vld [vmem:[%s4 + $0x48] sm:$0xff]
      %v556 = vld [vmem:[%s4 + $0x50] sm:$0xff]
      %v557 = vld [vmem:[%s4 + $0x58] sm:$0xff]
      %v558 = vld [vmem:[%s4 + $0x60] sm:$0xff]
      %v559 = vld [vmem:[%s4 + $0x68] sm:$0xff]
      %v560 = vld [vmem:[%s4 + $0x70] sm:$0xff]
      %v561 = vld [vmem:[%s4 + $0x78] sm:$0xff]
      %v562 = vld [vmem:[%s4 + $0x80] sm:$0xff]
      %v563 = vld [vmem:[%s4 + $0x88] sm:$0xff]
      %v564 = vld [vmem:[%s4 + $0x90] sm:$0xff]
      %v565 = vld [vmem:[%s4 + $0x98] sm:$0xff]
      %v566 = vld [vmem:[%s4 + $0xa0] sm:$0xff]
      %v567 = vld [vmem:[%s4 + $0xa8] sm:$0xff]
      %v568 = vld [vmem:[%s4 + $0xb0] sm:$0xff]
      %v569 = vld [vmem:[%s4 + $0xb8] sm:$0xff]
      %v570 = vld [vmem:[%s4 + $0xc0] sm:$0xff]
      %v571 = vld [vmem:[%s4 + $0xc8] sm:$0xff]
      %v572 = vld [vmem:[%s4 + $0xd0] sm:$0xff]
      %v573 = vld [vmem:[%s4 + $0xd8] sm:$0xff]
      %v574 = vld [vmem:[%s4 + $0xe0] sm:$0xff]
      %v575 = vld [vmem:[%s4 + $0xe8] sm:$0xff]
      %v576 = vld [vmem:[%s4 + $0xf0] sm:$0xff]
      %v577 = vld [vmem:[%s4 + $0xf8] sm:$0xff]
      %578 = vmatprep.subr.mxu0 0.0
      %579 = vmatpush1.msra.mxu0 %v561
      %580 = vmatprep.subr.mxu0 0.0
      %581 = vmatpush1.msra.mxu0 %v560
      %582 = vmatprep.subr.mxu0 0.0
      %583 = vmatpush1.msra.mxu0 %v559
      %584 = vmatprep.subr.mxu0 0.0
      %585 = vmatpush1.msra.mxu0 %v558
      %586 = vmatprep.subr.mxu0 0.0
      %587 = vmatpush1.msra.mxu0 %v557
      %588 = vmatprep.subr.mxu0 0.0
      %589 = vmatpush1.msra.mxu0 %v556
      %590 = vmatprep.subr.mxu0 0.0
      %591 = vmatpush1.msra.mxu0 %v555
      %592 = vmatprep.subr.mxu0 0.0
      %593 = vmatpush1.msra.mxu0 %v554
      %594 = vmatprep.subr.mxu0 0.0
      %595 = vmatpush1.msra.mxu0 %v553
      %596 = vmatprep.subr.mxu0 0.0
      %597 = vmatpush1.msra.mxu0 %v552
      %598 = vmatprep.subr.mxu0 0.0
      %599 = vmatpush1.msra.mxu0 %v551
      %600 = vmatprep.subr.mxu0 0.0
      %601 = vmatpush1.msra.mxu0 %v550
      %602 = vmatprep.subr.mxu0 0.0
      %603 = vmatpush1.msra.mxu0 %v549
      %604 = vmatprep.subr.mxu0 0.0
      %605 = vmatpush1.msra.mxu0 %v548
      %606 = vmatprep.subr.mxu0 0.0
      %607 = vmatpush1.msra.mxu0 %v547
      %608 = vmatprep.subr.mxu0 0.0
      %609 = vmatpush1.msra.mxu0 %v546
      %610 = vmatprep.subr.mxu0 0.0
      %611 = vmatpush2.msra.mxu0 %v577
      %612 = vmatprep.subr.mxu0 0.0
      %613 = vmatpush2.msra.mxu0 %v576
      %614 = vmatprep.subr.mxu0 0.0
      %615 = vmatpush2.msra.mxu0 %v575
      %616 = vmatprep.subr.mxu0 0.0
      %617 = vmatpush2.msra.mxu0 %v574
      %618 = vmatprep.subr.mxu0 0.0
      %619 = vmatpush2.msra.mxu0 %v573
      %620 = vmatprep.subr.mxu0 0.0
      %621 = vmatpush2.msra.mxu0 %v572
      %622 = vmatprep.subr.mxu0 0.0
      %623 = vmatpush2.msra.mxu0 %v571
      %624 = vmatprep.subr.mxu0 0.0
      %625 = vmatpush2.msra.mxu0 %v570
      %626 = vmatprep.subr.mxu0 0.0
      %627 = vmatpush2.msra.mxu0 %v569
      %628 = vmatprep.subr.mxu0 0.0
      %629 = vmatpush2.msra.mxu0 %v568
      %630 = vmatprep.subr.mxu0 0.0
      %631 = vmatpush2.msra.mxu0 %v567
      %632 = vmatprep.subr.mxu0 0.0
      %633 = vmatpush2.msra.mxu0 %v566
      %634 = vmatprep.subr.mxu0 0.0
      %635 = vmatpush2.msra.mxu0 %v565
      %636 = vmatprep.subr.mxu0 0.0
      %637 = vmatpush2.msra.mxu0 %v564
      %638 = vmatprep.subr.mxu0 0.0
      %639 = vmatpush2.msra.mxu0 %v563
      %640 = vmatprep.subr.mxu0 0.0
      %641 = vmatpush2.msra.mxu0 %v562
      %642 = vmatprep.mubr.f32.mxu0 %v226
      %643 = vmatmul.mubr.f32.gmra.mxu0 %v225
      %v644 = vpop.f32.mrf.mxu0
      %v645 = vadd.f32 0.0, %v644
      %v646 = vpop.f32.mrf.mxu0
      %647 = vmatprep.mubr.f32.mxu0 %v228
      %648 = vmatmul.mubr.f32.gmra.mxu0 %v227
      %v649 = vpop.f32.mrf.mxu0
      %v650 = vadd.f32 0.0, %v649
      %v651 = vpop.f32.mrf.mxu0
      %652 = vmatprep.mubr.f32.mxu0 %v230
      %653 = vmatmul.mubr.f32.gmra.mxu0 %v229
      %v654 = vpop.f32.mrf.mxu0
      %v655 = vadd.f32 0.0, %v654
      %v656 = vpop.f32.mrf.mxu0
      %657 = vmatprep.mubr.f32.mxu0 %v232
      %658 = vmatmul.mubr.f32.gmra.mxu0 %v231
      %v659 = vpop.f32.mrf.mxu0
      %v660 = vadd.f32 0.0, %v659
      %v661 = vpop.f32.mrf.mxu0
      %662 = vdwg.mxu0
      %vm663 = vcmask 130048
      %664 = vst.msk [vmem:[#allocation2] sm:$0xff] %vm663, %v528
      %665 = vst.msk [vmem:[#allocation2 + $0x8] sm:$0xff] %vm663, %v533
      %666 = vst.msk [vmem:[#allocation2 + $0x10] sm:$0xff] %vm663, %v538
      %667 = vst.msk [vmem:[#allocation2 + $0x18] sm:$0xff] %vm663, %v543
      %672 = vrot.lane.b32.xlu0 %v645, 16
      %v673 = vpop.permute.xlu0 %672
      %674 = vrot.lane.b32.xlu0 %v650, 16
      %v675 = vpop.permute.xlu0 %674
      %676 = vrot.lane.b32.xlu0 %v655, 16
      %v677 = vpop.permute.xlu0 %676
      %678 = vrot.lane.b32.xlu0 %v660, 16
      %v679 = vpop.permute.xlu0 %678
      %vm684 = vcmask 261248
      %685 = vst.msk [vmem:[#allocation2] sm:$0xff] %vm684, %v673
      %686 = vst.msk [vmem:[#allocation2 + $0x8] sm:$0xff] %vm684, %v675
      %687 = vst.msk [vmem:[#allocation2 + $0x10] sm:$0xff] %vm684, %v677
      %688 = vst.msk [vmem:[#allocation2 + $0x18] sm:$0xff] %vm684, %v679
      %v689 = vld [vmem:[%s1] sm:$0x3]
      %v690 = vld [vmem:[#allocation2] sm:$0xff]
      %v691 = vld [vmem:[#allocation2 + $0x8] sm:$0xff]
      %v692 = vld [vmem:[#allocation2 + $0x10] sm:$0xff]
      %v693 = vld [vmem:[#allocation2 + $0x18] sm:$0xff]
      %vm694 = vcmask 261120
      %v696 = vsel %vm694, %v689, 0
      %698 = vmatprep.subr.mxu0 0.0
      %699 = vmatpush1.msra.mxu0 0.0
      %700 = vmatprep.subr.mxu0 0.0
      %701 = vmatpush1.msra.mxu0 0.0
      %702 = vmatprep.subr.mxu0 0.0
      %703 = vmatpush1.msra.mxu0 0.0
      %704 = vmatprep.subr.mxu0 0.0
      %705 = vmatpush1.msra.mxu0 0.0
      %706 = vmatprep.subr.mxu0 0.0
      %707 = vmatpush1.msra.mxu0 0.0
      %708 = vmatprep.subr.mxu0 0.0
      %709 = vmatpush1.msra.mxu0 0.0
      %710 = vmatprep.subr.mxu0 0.0
      %711 = vmatpush1.msra.mxu0 0.0
      %712 = vmatprep.subr.mxu0 0.0
      %713 = vmatpush1.msra.mxu0 0.0
      %714 = vmatprep.subr.mxu0 0.0
      %715 = vmatpush1.msra.mxu0 0.0
      %716 = vmatprep.subr.mxu0 0.0
      %717 = vmatpush1.msra.mxu0 0.0
      %718 = vmatprep.subr.mxu0 0.0
      %719 = vmatpush1.msra.mxu0 0.0
      %720 = vmatprep.subr.mxu0 0.0
      %721 = vmatpush1.msra.mxu0 0.0
      %722 = vmatprep.subr.mxu0 0.0
      %723 = vmatpush1.msra.mxu0 %v693
      %724 = vmatprep.subr.mxu0 0.0
      %725 = vmatpush1.msra.mxu0 %v692
      %726 = vmatprep.subr.mxu0 0.0
      %727 = vmatpush1.msra.mxu0 %v691
      %728 = vmatprep.subr.mxu0 0.0
      %729 = vmatpush1.msra.mxu0 %v690
      %730 = vmatprep.subr.mxu0 0.0
      %731 = vmatpush2.msra.mxu0 0.0
      %732 = vmatprep.subr.mxu0 0.0
      %733 = vmatpush2.msra.mxu0 0.0
      %734 = vmatprep.subr.mxu0 0.0
      %735 = vmatpush2.msra.mxu0 0.0
      %736 = vmatprep.subr.mxu0 0.0
      %737 = vmatpush2.msra.mxu0 0.0
      %738 = vmatprep.subr.mxu0 0.0
      %739 = vmatpush2.msra.mxu0 0.0
      %740 = vmatprep.subr.mxu0 0.0
      %741 = vmatpush2.msra.mxu0 0.0
      %742 = vmatprep.subr.mxu0 0.0
      %743 = vmatpush2.msra.mxu0 0.0
      %744 = vmatprep.subr.mxu0 0.0
      %745 = vmatpush2.msra.mxu0 0.0
      %746 = vmatprep.subr.mxu0 0.0
      %747 = vmatpush2.msra.mxu0 0.0
      %748 = vmatprep.subr.mxu0 0.0
      %749 = vmatpush2.msra.mxu0 0.0
      %750 = vmatprep.subr.mxu0 0.0
      %751 = vmatpush2.msra.mxu0 0.0
      %752 = vmatprep.subr.mxu0 0.0
      %753 = vmatpush2.msra.mxu0 0.0
      %754 = vmatprep.subr.mxu0 0.0
      %755 = vmatpush2.msra.mxu0 0.0
      %756 = vmatprep.subr.mxu0 0.0
      %757 = vmatpush2.msra.mxu0 0.0
      %758 = vmatprep.subr.mxu0 0.0
      %759 = vmatpush2.msra.mxu0 0.0
      %760 = vmatprep.subr.mxu0 0.0
      %761 = vmatpush2.msra.mxu0 0.0
      %762 = vmatprep.mubr.f32.mxu0 0.0
      %763 = vmatmul.mubr.f32.gmra.mxu0 %v696
      %v764 = vpop.f32.mrf.mxu0
      %v765 = vadd.f32 0.0, %v764
      %v766 = vpop.f32.mrf.mxu0
      %767 = vdwg.mxu0
      %v768 = vmax.f32 %v765, 0.0
      %770 = vrot.lane.b32.xlu0 %v768, 112
      %v771 = vpop.permute.xlu0 %770
      %v773 = vadd.f32 %v768, %v771
      %v774 = vld [vmem:[%s2] sm:$0xff]
      %v775 = vld [vmem:[%s2 + $0x8] sm:$0xff]
      %v776 = vld [vmem:[%s2 + $0x10] sm:$0xff]
      %v777 = vld [vmem:[%s2 + $0x18] sm:$0xff]
      %779 = vset.pattern.permute.xlu0 0
      %780 = vperm.xlu0 %779, %v774
      %v781 = vpop.permute.xlu0 %780
      %784 = vset.pattern.permute.xlu0 0
      %785 = vperm.xlu0 %784, %v775
      %v786 = vpop.permute.xlu0 %785
      %789 = vset.pattern.permute.xlu0 0
      %790 = vperm.xlu0 %789, %v776
      %v791 = vpop.permute.xlu0 %790
      %794 = vset.pattern.permute.xlu0 0
      %795 = vperm.xlu0 %794, %v777
      %v796 = vpop.permute.xlu0 %795
      %v798 = vlaneseq
      %v799 = vshrl.u32 %v798, 7
      %v800 = vsub.s32 0, %v799
      %v801 = vrot.slane %v773, %v800
      %v802 = vmul.f32 %v781, %v801
      %v803 = vmul.f32 %v786, %v801
      %v804 = vmul.f32 %v791, %v801
      %v805 = vmul.f32 %v796, %v801
      %806 = vset.pattern.permute.xlu0 1
      %807 = vperm.xlu0 %806, %v774
      %v808 = vpop.permute.xlu0 %807
      %810 = vset.pattern.permute.xlu0 1
      %811 = vperm.xlu0 %810, %v775
      %v812 = vpop.permute.xlu0 %811
      %814 = vset.pattern.permute.xlu0 1
      %815 = vperm.xlu0 %814, %v776
      %v816 = vpop.permute.xlu0 %815
      %818 = vset.pattern.permute.xlu0 1
      %819 = vperm.xlu0 %818, %v777
      %v820 = vpop.permute.xlu0 %819
      %v822 = vlaneseq
      %v823 = vshrl.u32 %v822, 7
      %v824 = vsub.s32 1, %v823
      %v825 = vrot.slane %v773, %v824
      %v826 = vmul.f32 %v808, %v825
      %v827 = vmul.f32 %v812, %v825
      %v828 = vmul.f32 %v816, %v825
      %v829 = vmul.f32 %v820, %v825
      %v830 = vadd.f32 %v802, %v826
      %v831 = vadd.f32 %v803, %v827
      %v832 = vadd.f32 %v804, %v828
      %v833 = vadd.f32 %v805, %v829
      %v834 = vxor.u32 %v830, 2147483648
      %v835 = vxor.u32 %v831, 2147483648
      %v836 = vxor.u32 %v832, 2147483648
      %v837 = vxor.u32 %v833, 2147483648
      %v838 = vmul.f32 %v834, 1.442695
      %v839 = vpow.pop %v838
      %v840 = vmul.f32 %v835, 1.442695
      %v841 = vpow.pop %v840
      %v842 = vmul.f32 %v836, 1.442695
      %v843 = vpow.pop %v842
      %v844 = vmul.f32 %v837, 1.442695
      %v845 = vpow.pop %v844
      %v846 = vadd.f32 %v839, 1.0
      %v847 = vadd.f32 %v841, 1.0
      %v848 = vadd.f32 %v843, 1.0
      %v849 = vadd.f32 %v845, 1.0
      %v850 = vrcp.pop %v846
      %v851 = vmul.f32 1.0, %v850
      %v852 = vrcp.pop %v847
      %v853 = vmul.f32 1.0, %v852
      %v854 = vrcp.pop %v848
      %v855 = vmul.f32 1.0, %v854
      %v856 = vrcp.pop %v849
      %v857 = vmul.f32 1.0, %v856
      %858 = vst.msk [vmem:[%s224] sm:$0xff] %vm663, %v851
      %859 = vst.msk [vmem:[%s224 + $0x8] sm:$0xff] %vm663, %v853
      %860 = vst.msk [vmem:[%s224 + $0x10] sm:$0xff] %vm663, %v855
      %861 = vst.msk [vmem:[%s224 + $0x18] sm:$0xff] %vm663, %v857
      %p862 = scmp.lt.s32.totalorder %s16, 1
      %s863 = scalar_select %p862, %s16, 1
      %s864 = smul.addr %s863, 4
      %s865 = smul.addr %s864, 8
      %s866 = scalar_lea.vmem %s5, %s865
      // Predicated region
      $region41: #{tpu_custom_call.1} parent=39 // pred_check
        %p867 = pneg %p144
      $region42: #{tpu_custom_call.1} parent=39 // pred_check_branch
        %869 = sbr.rel (%p867) target = $region44
      $region43: #{tpu_custom_call.1} parent=39 // pred_region
        _
      $region44: #{tpu_custom_call.1} parent=39 // pred_fallthru
        _
    $region40: #{tpu_custom_call.1} parent=5 // pred_fallthru
      _
    %p870 = scmp.le.s32.totalorder 2, %s11
    // Predicated region
    $region45: #{tpu_custom_call.1} parent=5 // pred_check
      %p871 = pneg %p870
    $region46: #{tpu_custom_call.1} parent=5 // pred_check_branch
      %873 = sbr.rel (%p871) target = $region48
    $region47: #{tpu_custom_call.1} parent=5 // pred_region
      %s874 = ssub.s32 %s11, 2
      // Predicated region
      $region49: #{tpu_custom_call.1} parent=47 // pred_check
        %p875 = pneg %p150
      $region50: #{tpu_custom_call.1} parent=47 // pred_check_branch
        %877 = sbr.rel (%p875) target = $region52
      $region51: #{tpu_custom_call.1} parent=47 // pred_region
        %p878 = scmp.lt.s32.totalorder %s17, 1
        %s879 = scalar_select %p878, %s17, 1
        %s880 = smul.addr %s879, 4
        %s881 = smul.addr %s880, 8
        %s882 = scalar_lea.vmem %s5, %s881
      $region52: #{tpu_custom_call.1} parent=47 // pred_fallthru
        _
    $region48: #{tpu_custom_call.1} parent=5 // pred_fallthru
      _
  $region6: #{tpu_custom_call.1} parent=0 // loop_footer
    %s15 = sadd.s32 1, %s11
  $region7: #{tpu_custom_call.1} parent=0 // loop_footer_branch
    %10 = sbr.rel target = $region3
  $region8: #{tpu_custom_call.1} parent=0 // loop_exit
    _

</llo_original>
